<compile_context>
chip_gen: v6e
topology: v6e:2x2x1
jax: 0.10.0
libtpu: 0.0.40
codegen_flags: <defaults>
</compile_context>

<pallas_src>
import functools

import jax
import jax.numpy as jnp
from jax.experimental import pallas as pl
from jax.experimental.pallas import tpu as pltpu


def _round_up(x, m):
    return (x + m - 1) // m * m


def _cdiv(a, b):
    return (a + b - 1) // b


def actor_kernel(x_ref, w1_ref, b1_ref, w2_ref, b2_ref,
                 w3_ref, b3_ref, scale_ref, bias_ref, o_ref):
    # fc1 + relu  (f32 accumulation regardless of operand dtype)
    x = x_ref[...]
    h1 = jnp.dot(x, w1_ref[...], preferred_element_type=jnp.float32) + b1_ref[...]
    h1 = jnp.maximum(h1, 0.0)
    # fc2 + relu  (cast activation to weight dtype so bf16 weights hit the
    # native MXU rate; no-op cast in the f32 path; elementwise math stays f32)
    h2 = jnp.dot(h1.astype(w2_ref.dtype), w2_ref[...],
                 preferred_element_type=jnp.float32) + b2_ref[...]
    h2 = jnp.maximum(h2, 0.0)
    # fc_mu + tanh
    mu = jnp.tanh(jnp.dot(h2.astype(w3_ref.dtype), w3_ref[...],
                          preferred_element_type=jnp.float32) + b3_ref[...])
    # rescale to action range (f32); block last dim == full act_dim, so this
    # store carries only real data (no 128-lane padding).
    o_ref[...] = mu * scale_ref[...] + bias_ref[...]


@functools.partial(jax.jit,
                   static_argnames=("block_batch", "use_bf16", "core_parallel"))
def actor_forward(x, params, *, block_batch=4096, use_bf16=True,
                  core_parallel=False):
    """x: (batch, *obs_shape) float32. Returns (batch, act_dim) float32."""
    batch = x.shape[0]
    x2d = x.reshape(batch, -1).astype(jnp.float32)   # x.view(x.size(0), -1)
    obs_dim = x2d.shape[1]

    w1, b1, w2, b2, w3, b3, scale, bias = params
    hidden = w1.shape[1]
    act_dim = w3.shape[1]

    # ---- optional bf16 matmul operands (accumulation stays f32) ----
    op_dtype = jnp.bfloat16 if use_bf16 else jnp.float32
    op_bytes = jnp.dtype(op_dtype).itemsize

    # ---- batch tiling ----
    # Even-split so padding waste is bounded to <16 rows per tile (avoids the
    # near-2x blow-up of rounding the whole batch up to block_batch).
    num_tiles = max(1, _cdiv(batch, block_batch))
    tb = _round_up(_cdiv(batch, num_tiles), 16)
    # VMEM safety cap: keep double-buffered x + out streams under ~12 MiB so
    # the tile fits v5e's 16 MiB scoped default (and trivially v7x's 64 MiB).
    per_row_bytes = obs_dim * op_bytes + act_dim * 4
    tb_cap = max(16, (12 * 1024 * 1024 // (2 * per_row_bytes)) // 16 * 16)
    tb = max(16, min(tb, tb_cap))
    batch_pad = _round_up(batch, tb)
    if batch_pad != batch:
        x2d = jnp.pad(x2d, ((0, batch_pad - batch), (0, 0)))
    grid = (batch_pad // tb,)

    x_in = x2d.astype(op_dtype)
    w1_in = w1.astype(op_dtype)
    w2_in = w2.astype(op_dtype)
    w3_in = w3.astype(op_dtype)

    cost = pl.CostEstimate(
        flops=2 * batch_pad * (obs_dim * hidden + hidden * hidden
                               + hidden * act_dim),
        transcendentals=batch_pad * act_dim,
        bytes_accessed=(batch_pad * obs_dim * op_bytes            # x
                        + batch_pad * act_dim * 4                 # out
                        + (obs_dim * hidden + hidden * hidden
                           + hidden * act_dim) * op_bytes         # weights
                        + (hidden + hidden + 3 * act_dim) * 4))   # biases/scale

    # weights / biases stay VMEM-resident across grid steps (constant index_map)
    def resident(shape):
        return pl.BlockSpec(shape, lambda i: (0, 0))

    # On v7x set core_parallel=True so the batch tiles are split across the
    # two TensorCores; "parallel" is the portable default elsewhere.
    dim_sem = (pltpu.CORE_PARALLEL,) if core_parallel else ("parallel",)

    out_full = pl.pallas_call(
        actor_kernel,
        out_shape=jax.ShapeDtypeStruct((batch_pad, act_dim), jnp.float32),
        grid=grid,
        in_specs=[
            pl.BlockSpec((tb, obs_dim), lambda i: (i, 0)),   # x tile (pipelined)
            resident(w1_in.shape), resident(b1.shape),
            resident(w2_in.shape), resident(b2.shape),
            resident(w3_in.shape), resident(b3.shape),
            resident(scale.shape), resident(bias.shape),
        ],
        out_specs=pl.BlockSpec((tb, act_dim), lambda i: (i, 0)),
        compiler_params=pltpu.CompilerParams(dimension_semantics=dim_sem),
        cost_estimate=cost,
    )(x_in, w1_in, b1, w2_in, b2, w3_in, b3, scale, bias)

    return out_full[:batch, :]


def init_params(key, obs_dim, act_dim, hidden=32):
    """Deterministic synthetic parameters (PyTorch Linear shapes, transposed)."""
    ks = jax.random.split(key, 6)

    def linear(kw, kb, fan_in, fan_out):
        bound = 1.0 / jnp.sqrt(fan_in)
        w = jax.random.uniform(kw, (fan_in, fan_out), jnp.float32, -bound, bound)
        b = jax.random.uniform(kb, (1, fan_out), jnp.float32, -bound, bound)
        return w, b

    w1, b1 = linear(ks[0], ks[1], obs_dim, hidden)
    w2, b2 = linear(ks[2], ks[3], hidden, hidden)
    w3, b3 = linear(ks[4], ks[5], hidden, act_dim)

    # Synthetic action space: low = -2, high = 2  ->  scale = 2, bias = 0
    action_low = jnp.full((act_dim,), -2.0, jnp.float32)
    action_high = jnp.full((act_dim,), 2.0, jnp.float32)
    action_scale = ((action_high - action_low) / 2.0).reshape(1, act_dim)
    action_bias = ((action_high + action_low) / 2.0).reshape(1, act_dim)

    return (w1, b1, w2, b2, w3, b3, action_scale, action_bias)


def actor_reference(x, params):
    """Pure-JAX reference for correctness check."""
    w1, b1, w2, b2, w3, b3, scale, bias = params
    h = x.reshape(x.shape[0], -1)
    h = jnp.maximum(h @ w1 + b1, 0.0)
    h = jnp.maximum(h @ w2 + b2, 0.0)
    mu = jnp.tanh(h @ w3 + b3)
    return mu * scale + bias


if __name__ == "__main__":
    key = jax.random.PRNGKey(0)
    k_obs, k_params = jax.random.split(key)

    batch = 8
    obs_shape = (4, 4)          # env.single_observation_space.shape -> flattened to 16
    act_dim = 4                 # env.single_action_space.shape = (4,)
    obs_dim = 16

    x = jax.random.normal(k_obs, (batch,) + obs_shape, dtype=jnp.float32)
    params = init_params(k_params, obs_dim, act_dim, hidden=32)
    ref = actor_reference(x, params)

    # f32 path: tight tolerance
    out = actor_forward(x, params, use_bf16=False)
    out = jax.block_until_ready(out)
    assert out.shape == (batch, act_dim)
    assert out.dtype == jnp.float32
    assert jnp.allclose(out, ref, atol=1e-5, rtol=1e-5)

    # bf16 matmul-operand path (default): MXU-native / half HBM bytes for x,
    # looser tolerance since activations are re-cast to bf16 between layers.
    out_bf16 = actor_forward(x, params, use_bf16=True)
    out_bf16 = jax.block_until_ready(out_bf16)
    assert out_bf16.shape == (batch, act_dim)
    assert out_bf16.dtype == jnp.float32
    assert jnp.allclose(out_bf16, ref, atol=2e-2, rtol=2e-2)

    print("KERNEL_OK")
</pallas_src>

<mosaic_0001>
module attributes {stable_mosaic.version = 11 : i64} {
  func.func @actor_kernel(%arg0: i32, %arg1: memref<16x16xf32, #tpu.memory_space<vmem>>, %arg2: memref<16x32xf32, #tpu.memory_space<vmem>>, %arg3: memref<1x32xf32, #tpu.memory_space<vmem>>, %arg4: memref<32x32xf32, #tpu.memory_space<vmem>>, %arg5: memref<1x32xf32, #tpu.memory_space<vmem>>, %arg6: memref<32x4xf32, #tpu.memory_space<vmem>>, %arg7: memref<1x4xf32, #tpu.memory_space<vmem>>, %arg8: memref<1x4xf32, #tpu.memory_space<vmem>>, %arg9: memref<1x4xf32, #tpu.memory_space<vmem>>, %arg10: memref<16x4xf32, #tpu.memory_space<vmem>>) attributes {dimension_semantics = [#tpu.dimension_semantics<parallel>], iteration_bounds = array<i64: 1>, scalar_prefetch = 0 : i64, scratch_operands = 0 : i64, tpu.core_type = #tpu.core_type<tc>, window_params = [{transform_indices = @transform_0, window_bounds = array<i64: 16, 16>}, {pipeline_mode = #tpu.pipeline_mode<synchronous>, transform_indices = @transform_1, window_bounds = array<i64: 16, 32>}, {pipeline_mode = #tpu.pipeline_mode<synchronous>, transform_indices = @transform_2, window_bounds = array<i64: 1, 32>}, {pipeline_mode = #tpu.pipeline_mode<synchronous>, transform_indices = @transform_3, window_bounds = array<i64: 32, 32>}, {pipeline_mode = #tpu.pipeline_mode<synchronous>, transform_indices = @transform_4, window_bounds = array<i64: 1, 32>}, {pipeline_mode = #tpu.pipeline_mode<synchronous>, transform_indices = @transform_5, window_bounds = array<i64: 32, 4>}, {pipeline_mode = #tpu.pipeline_mode<synchronous>, transform_indices = @transform_6, window_bounds = array<i64: 1, 4>}, {pipeline_mode = #tpu.pipeline_mode<synchronous>, transform_indices = @transform_7, window_bounds = array<i64: 1, 4>}, {pipeline_mode = #tpu.pipeline_mode<synchronous>, transform_indices = @transform_8, window_bounds = array<i64: 1, 4>}, {transform_indices = @transform_9, window_bounds = array<i64: 16, 4>}]} {
    %c0 = arith.constant 0 : index
    %c0_0 = arith.constant 0 : index
    %0 = vector.load %arg1[%c0, %c0_0] : memref<16x16xf32, #tpu.memory_space<vmem>>, vector<16x16xf32>
    %c0_1 = arith.constant 0 : index
    %c0_2 = arith.constant 0 : index
    %1 = vector.load %arg2[%c0_1, %c0_2] : memref<16x32xf32, #tpu.memory_space<vmem>>, vector<16x32xf32>
    %cst = arith.constant dense<0.000000e+00> : vector<16x32xf32>
    %2 = tpu.matmul %0, %1, %cst {dimension_numbers = #tpu.dot_dimension_numbers<[1], [0], [0], [1], [0, 0, 1, 1], [], []>} : vector<16x16xf32>, vector<16x32xf32>, vector<16x32xf32> -> vector<16x32xf32>
    %c0_3 = arith.constant 0 : index
    %c0_4 = arith.constant 0 : index
    %3 = vector.load %arg3[%c0_3, %c0_4] : memref<1x32xf32, #tpu.memory_space<vmem>>, vector<1x32xf32>
    %4 = vector.broadcast %3 : vector<1x32xf32> to vector<16x32xf32>
    %5 = arith.addf %2, %4 : vector<16x32xf32>
    %cst_5 = arith.constant 0.000000e+00 : f32
    %6 = vector.broadcast %cst_5 : f32 to vector<16x32xf32>
    %7 = arith.maximumf %5, %6 : vector<16x32xf32>
    %c0_6 = arith.constant 0 : index
    %c0_7 = arith.constant 0 : index
    %8 = vector.load %arg4[%c0_6, %c0_7] : memref<32x32xf32, #tpu.memory_space<vmem>>, vector<32x32xf32>
    %cst_8 = arith.constant dense<0.000000e+00> : vector<16x32xf32>
    %9 = tpu.matmul %7, %8, %cst_8 {dimension_numbers = #tpu.dot_dimension_numbers<[1], [0], [0], [1], [0, 0, 1, 1], [], []>} : vector<16x32xf32>, vector<32x32xf32>, vector<16x32xf32> -> vector<16x32xf32>
    %c0_9 = arith.constant 0 : index
    %c0_10 = arith.constant 0 : index
    %10 = vector.load %arg5[%c0_9, %c0_10] : memref<1x32xf32, #tpu.memory_space<vmem>>, vector<1x32xf32>
    %11 = vector.broadcast %10 : vector<1x32xf32> to vector<16x32xf32>
    %12 = arith.addf %9, %11 : vector<16x32xf32>
    %cst_11 = arith.constant 0.000000e+00 : f32
    %13 = vector.broadcast %cst_11 : f32 to vector<16x32xf32>
    %14 = arith.maximumf %12, %13 : vector<16x32xf32>
    %c0_12 = arith.constant 0 : index
    %c0_13 = arith.constant 0 : index
    %15 = vector.load %arg6[%c0_12, %c0_13] : memref<32x4xf32, #tpu.memory_space<vmem>>, vector<32x4xf32>
    %cst_14 = arith.constant dense<0.000000e+00> : vector<16x4xf32>
    %16 = tpu.matmul %14, %15, %cst_14 {dimension_numbers = #tpu.dot_dimension_numbers<[1], [0], [0], [1], [0, 0, 1, 1], [], []>} : vector<16x32xf32>, vector<32x4xf32>, vector<16x4xf32> -> vector<16x4xf32>
    %c0_15 = arith.constant 0 : index
    %c0_16 = arith.constant 0 : index
    %17 = vector.load %arg7[%c0_15, %c0_16] : memref<1x4xf32, #tpu.memory_space<vmem>>, vector<1x4xf32>
    %18 = vector.broadcast %17 : vector<1x4xf32> to vector<16x4xf32>
    %19 = arith.addf %16, %18 : vector<16x4xf32>
    %20 = math.tanh %19 : vector<16x4xf32>
    %c0_17 = arith.constant 0 : index
    %c0_18 = arith.constant 0 : index
    %21 = vector.load %arg8[%c0_17, %c0_18] : memref<1x4xf32, #tpu.memory_space<vmem>>, vector<1x4xf32>
    %22 = vector.broadcast %21 : vector<1x4xf32> to vector<16x4xf32>
    %23 = arith.mulf %20, %22 : vector<16x4xf32>
    %c0_19 = arith.constant 0 : index
    %c0_20 = arith.constant 0 : index
    %24 = vector.load %arg9[%c0_19, %c0_20] : memref<1x4xf32, #tpu.memory_space<vmem>>, vector<1x4xf32>
    %25 = vector.broadcast %24 : vector<1x4xf32> to vector<16x4xf32>
    %26 = arith.addf %23, %25 : vector<16x4xf32>
    %c0_21 = arith.constant 0 : index
    %c0_22 = arith.constant 0 : index
    %27 = vector.load %arg10[%c0_21, %c0_22] : memref<16x4xf32, #tpu.memory_space<vmem>>, vector<16x4xf32>
    tpu.vector_store %arg10[%c0_21, %c0_22], %26 {strides = array<i32>} : memref<16x4xf32, #tpu.memory_space<vmem>>, vector<16x4xf32>,
    return
  }
  func.func @transform_0(%arg0: i32) -> (i32, i32) {
    %c0_i32 = arith.constant 0 : i32
    %c0_i32_0 = arith.constant 0 : i32
    return %arg0, %c0_i32 : i32, i32
  }
  func.func @transform_1(%arg0: i32) -> (i32, i32) {
    %c0_i32 = arith.constant 0 : i32
    %c0_i32_0 = arith.constant 0 : i32
    %c0_i32_1 = arith.constant 0 : i32
    return %c0_i32, %c0_i32_0 : i32, i32
  }
  func.func @transform_2(%arg0: i32) -> (i32, i32) {
    %c0_i32 = arith.constant 0 : i32
    %c0_i32_0 = arith.constant 0 : i32
    %c0_i32_1 = arith.constant 0 : i32
    return %c0_i32, %c0_i32_0 : i32, i32
  }
  func.func @transform_3(%arg0: i32) -> (i32, i32) {
    %c0_i32 = arith.constant 0 : i32
    %c0_i32_0 = arith.constant 0 : i32
    %c0_i32_1 = arith.constant 0 : i32
    return %c0_i32, %c0_i32_0 : i32, i32
  }
  func.func @transform_4(%arg0: i32) -> (i32, i32) {
    %c0_i32 = arith.constant 0 : i32
    %c0_i32_0 = arith.constant 0 : i32
    %c0_i32_1 = arith.constant 0 : i32
    return %c0_i32, %c0_i32_0 : i32, i32
  }
  func.func @transform_5(%arg0: i32) -> (i32, i32) {
    %c0_i32 = arith.constant 0 : i32
    %c0_i32_0 = arith.constant 0 : i32
    %c0_i32_1 = arith.constant 0 : i32
    return %c0_i32, %c0_i32_0 : i32, i32
  }
  func.func @transform_6(%arg0: i32) -> (i32, i32) {
    %c0_i32 = arith.constant 0 : i32
    %c0_i32_0 = arith.constant 0 : i32
    %c0_i32_1 = arith.constant 0 : i32
    return %c0_i32, %c0_i32_0 : i32, i32
  }
  func.func @transform_7(%arg0: i32) -> (i32, i32) {
    %c0_i32 = arith.constant 0 : i32
    %c0_i32_0 = arith.constant 0 : i32
    %c0_i32_1 = arith.constant 0 : i32
    return %c0_i32, %c0_i32_0 : i32, i32
  }
  func.func @transform_8(%arg0: i32) -> (i32, i32) {
    %c0_i32 = arith.constant 0 : i32
    %c0_i32_0 = arith.constant 0 : i32
    %c0_i32_1 = arith.constant 0 : i32
    return %c0_i32, %c0_i32_0 : i32, i32
  }
  func.func @transform_9(%arg0: i32) -> (i32, i32) {
    %c0_i32 = arith.constant 0 : i32
    %c0_i32_0 = arith.constant 0 : i32
    return %arg0, %c0_i32 : i32, i32
  }
}

</mosaic_0001>

<llo_original>
// kernel: actor_forward.1
$region0: #{actor_forward.1}
  #allocation0 [shape = 'u32[]', space=smem, size = 0x4, offset = 0x4, fixed_abs, tag = 'smem constant byte address 0x4 - core index']
  #allocation1 [shape = 'u32[144,128]{1,0:T(1,128)}', space=vmem, size = 0x12000, scoped, tag = 'internal scratch']
  %s0 = inlined_call_operand.vmem [shape: f32[16,16], index: 0, kind: input, shape index: {}]
  %s1 = inlined_call_operand.vmem [shape: f32[16,32], index: 1, kind: input, shape index: {}]
  %s2 = inlined_call_operand.vmem [shape: f32[1,32], index: 2, kind: input, shape index: {}]
  %s3 = inlined_call_operand.vmem [shape: f32[32,32], index: 3, kind: input, shape index: {}]
  %s4 = inlined_call_operand.vmem [shape: f32[1,32], index: 4, kind: input, shape index: {}]
  %s5 = inlined_call_operand.vmem [shape: f32[32,4], index: 5, kind: input, shape index: {}]
  %s6 = inlined_call_operand.vmem [shape: f32[1,4], index: 6, kind: input, shape index: {}]
  %s7 = inlined_call_operand.vmem [shape: f32[1,4], index: 7, kind: input, shape index: {}]
  %s8 = inlined_call_operand.vmem [shape: f32[1,4], index: 8, kind: input, shape index: {}]
  %s9 = inlined_call_operand.vmem [shape: f32[16,4], index: 9, kind: output, shape index: {}]
  %s10 = sld [smem:[#allocation0]]
  $region46: #{actor_forward.1} parent=0
    _
  %s12 = ssub.s32 1, %s10
  %s13 = scalar_select 0, %s12, %s10
  // Predicated region
  $region2: #{actor_forward.1} parent=0 // pred_check
    _
  $region3: #{actor_forward.1} parent=0 // pred_check_branch
    %15 = sbr.rel (0) target = $region5
  $region4: #{actor_forward.1} parent=0 // pred_region
    _
  $region5: #{actor_forward.1} parent=0 // pred_fallthru
    _
  // Predicated region
  $region6: #{actor_forward.1} parent=0 // pred_check
    _
  $region7: #{actor_forward.1} parent=0 // pred_check_branch
    %17 = sbr.rel (0) target = $region9
  $region8: #{actor_forward.1} parent=0 // pred_region
    _
  $region9: #{actor_forward.1} parent=0 // pred_fallthru
    _
  // Predicated region
  $region10: #{actor_forward.1} parent=0 // pred_check
    _
  $region11: #{actor_forward.1} parent=0 // pred_check_branch
    %19 = sbr.rel (0) target = $region13
  $region12: #{actor_forward.1} parent=0 // pred_region
    _
  $region13: #{actor_forward.1} parent=0 // pred_fallthru
    _
  // Predicated region
  $region14: #{actor_forward.1} parent=0 // pred_check
    _
  $region15: #{actor_forward.1} parent=0 // pred_check_branch
    %21 = sbr.rel (0) target = $region17
  $region16: #{actor_forward.1} parent=0 // pred_region
    _
  $region17: #{actor_forward.1} parent=0 // pred_fallthru
    _
  // Predicated region
  $region18: #{actor_forward.1} parent=0 // pred_check
    _
  $region19: #{actor_forward.1} parent=0 // pred_check_branch
    %23 = sbr.rel (0) target = $region21
  $region20: #{actor_forward.1} parent=0 // pred_region
    _
  $region21: #{actor_forward.1} parent=0 // pred_fallthru
    _
  // Predicated region
  $region22: #{actor_forward.1} parent=0 // pred_check
    _
  $region23: #{actor_forward.1} parent=0 // pred_check_branch
    %25 = sbr.rel (0) target = $region25
  $region24: #{actor_forward.1} parent=0 // pred_region
    _
  $region25: #{actor_forward.1} parent=0 // pred_fallthru
    _
  // Predicated region
  $region26: #{actor_forward.1} parent=0 // pred_check
    _
  $region27: #{actor_forward.1} parent=0 // pred_check_branch
    %27 = sbr.rel (0) target = $region29
  $region28: #{actor_forward.1} parent=0 // pred_region
    _
  $region29: #{actor_forward.1} parent=0 // pred_fallthru
    _
  // Predicated region
  $region30: #{actor_forward.1} parent=0 // pred_check
    _
  $region31: #{actor_forward.1} parent=0 // pred_check_branch
    %29 = sbr.rel (0) target = $region33
  $region32: #{actor_forward.1} parent=0 // pred_region
    _
  $region33: #{actor_forward.1} parent=0 // pred_fallthru
    _
  // Predicated region
  $region34: #{actor_forward.1} parent=0 // pred_check
    _
  $region35: #{actor_forward.1} parent=0 // pred_check_branch
    %31 = sbr.rel (0) target = $region37
  $region36: #{actor_forward.1} parent=0 // pred_region
    _
  $region37: #{actor_forward.1} parent=0 // pred_fallthru
    _
  %v32 = vld [vmem:[%s0] sm:$0xff]
  %v33 = vld [vmem:[%s0 + $0x8] sm:$0xff]
  %v34 = vld [vmem:[%s1] sm:$0xff]
  %v35 = vld [vmem:[%s1 + $0x8] sm:$0xff]
  %v36 = vld [vmem:[%s2] sm:$0x1]
  %v38 = vlaneseq
  %v39 = vshrl.u32 %v38, 7
  %v40 = vsub.s32 0, %v39
  %v41 = vrot.slane %v36, %v40
  %vm43 = vcmask 130048
  %v45 = vsel %vm43, %v32, 0
  %v48 = vsel %vm43, %v33, 0
  %50 = vmatprep.subr.mxu0 0.0
  %51 = vmatpush1.msra.mxu0 0.0
  %52 = vmatprep.subr.mxu0 0.0
  %53 = vmatpush1.msra.mxu0 0.0
  %54 = vmatprep.subr.mxu0 0.0
  %55 = vmatpush1.msra.mxu0 0.0
  %56 = vmatprep.subr.mxu0 0.0
  %57 = vmatpush1.msra.mxu0 0.0
  %58 = vmatprep.subr.mxu0 0.0
  %59 = vmatpush1.msra.mxu0 0.0
  %60 = vmatprep.subr.mxu0 0.0
  %61 = vmatpush1.msra.mxu0 0.0
  %62 = vmatprep.subr.mxu0 0.0
  %63 = vmatpush1.msra.mxu0 0.0
  %64 = vmatprep.subr.mxu0 0.0
  %65 = vmatpush1.msra.mxu0 0.0
  %66 = vmatprep.subr.mxu0 0.0
  %67 = vmatpush1.msra.mxu0 0.0
  %68 = vmatprep.subr.mxu0 0.0
  %69 = vmatpush1.msra.mxu0 0.0
  %70 = vmatprep.subr.mxu0 0.0
  %71 = vmatpush1.msra.mxu0 0.0
  %72 = vmatprep.subr.mxu0 0.0
  %73 = vmatpush1.msra.mxu0 0.0
  %74 = vmatprep.subr.mxu0 0.0
  %75 = vmatpush1.msra.mxu0 0.0
  %76 = vmatprep.subr.mxu0 0.0
  %77 = vmatpush1.msra.mxu0 0.0
  %78 = vmatprep.subr.mxu0 0.0
  %79 = vmatpush1.msra.mxu0 %v35
  %80 = vmatprep.subr.mxu0 0.0
  %81 = vmatpush1.msra.mxu0 %v34
  %82 = vmatprep.subr.mxu0 0.0
  %83 = vmatpush2.msra.mxu0 0.0
  %84 = vmatprep.subr.mxu0 0.0
  %85 = vmatpush2.msra.mxu0 0.0
  %86 = vmatprep.subr.mxu0 0.0
  %87 = vmatpush2.msra.mxu0 0.0
  %88 = vmatprep.subr.mxu0 0.0
  %89 = vmatpush2.msra.mxu0 0.0
  %90 = vmatprep.subr.mxu0 0.0
  %91 = vmatpush2.msra.mxu0 0.0
  %92 = vmatprep.subr.mxu0 0.0
  %93 = vmatpush2.msra.mxu0 0.0
  %94 = vmatprep.subr.mxu0 0.0
  %95 = vmatpush2.msra.mxu0 0.0
  %96 = vmatprep.subr.mxu0 0.0
  %97 = vmatpush2.msra.mxu0 0.0
  %98 = vmatprep.subr.mxu0 0.0
  %99 = vmatpush2.msra.mxu0 0.0
  %100 = vmatprep.subr.mxu0 0.0
  %101 = vmatpush2.msra.mxu0 0.0
  %102 = vmatprep.subr.mxu0 0.0
  %103 = vmatpush2.msra.mxu0 0.0
  %104 = vmatprep.subr.mxu0 0.0
  %105 = vmatpush2.msra.mxu0 0.0
  %106 = vmatprep.subr.mxu0 0.0
  %107 = vmatpush2.msra.mxu0 0.0
  %108 = vmatprep.subr.mxu0 0.0
  %109 = vmatpush2.msra.mxu0 0.0
  %110 = vmatprep.subr.mxu0 0.0
  %111 = vmatpush2.msra.mxu0 0.0
  %112 = vmatprep.subr.mxu0 0.0
  %113 = vmatpush2.msra.mxu0 0.0
  %114 = vmatprep.mubr.f32.mxu0 0.0
  %115 = vmatmul.mubr.f32.gmra.mxu0 %v45
  %v116 = vpop.f32.mrf.mxu0
  %v117 = vadd.f32 %v41, %v116
  %v118 = vpop.f32.mrf.mxu0
  %119 = vmatprep.mubr.f32.mxu0 0.0
  %120 = vmatmul.mubr.f32.gmra.mxu0 %v48
  %v121 = vpop.f32.mrf.mxu0
  %v122 = vadd.f32 %v41, %v121
  %v123 = vpop.f32.mrf.mxu0
  %124 = vdwg.mxu0
  %v125 = vmax.f32 %v117, 0.0
  %v126 = vmax.f32 %v122, 0.0
  %v127 = vld [vmem:[%s3] sm:$0xff]
  %v128 = vld [vmem:[%s3 + $0x8] sm:$0xff]
  %v129 = vld [vmem:[%s3 + $0x10] sm:$0xff]
  %v130 = vld [vmem:[%s3 + $0x18] sm:$0xff]
  %v131 = vld [vmem:[%s4] sm:$0x1]
  %v133 = vlaneseq
  %v134 = vshrl.u32 %v133, 7
  %v135 = vsub.s32 0, %v134
  %v136 = vrot.slane %v131, %v135
  %vm138 = vcmask 261120
  %v140 = vsel %vm138, %v125, 0
  %v143 = vsel %vm138, %v126, 0
  %145 = vmatprep.subr.mxu0 0.0
  %146 = vmatpush1.msra.mxu0 0.0
  %147 = vmatprep.subr.mxu0 0.0
  %148 = vmatpush1.msra.mxu0 0.0
  %149 = vmatprep.subr.mxu0 0.0
  %150 = vmatpush1.msra.mxu0 0.0
  %151 = vmatprep.subr.mxu0 0.0
  %152 = vmatpush1.msra.mxu0 0.0
  %153 = vmatprep.subr.mxu0 0.0
  %154 = vmatpush1.msra.mxu0 0.0
  %155 = vmatprep.subr.mxu0 0.0
  %156 = vmatpush1.msra.mxu0 0.0
  %157 = vmatprep.subr.mxu0 0.0
  %158 = vmatpush1.msra.mxu0 0.0
  %159 = vmatprep.subr.mxu0 0.0
  %160 = vmatpush1.msra.mxu0 0.0
  %161 = vmatprep.subr.mxu0 0.0
  %162 = vmatpush1.msra.mxu0 0.0
  %163 = vmatprep.subr.mxu0 0.0
  %164 = vmatpush1.msra.mxu0 0.0
  %165 = vmatprep.subr.mxu0 0.0
  %166 = vmatpush1.msra.mxu0 0.0
  %167 = vmatprep.subr.mxu0 0.0
  %168 = vmatpush1.msra.mxu0 0.0
  %169 = vmatprep.subr.mxu0 0.0
  %170 = vmatpush1.msra.mxu0 %v130
  %171 = vmatprep.subr.mxu0 0.0
  %172 = vmatpush1.msra.mxu0 %v129
  %173 = vmatprep.subr.mxu0 0.0
  %174 = vmatpush1.msra.mxu0 %v128
  %175 = vmatprep.subr.mxu0 0.0
  %176 = vmatpush1.msra.mxu0 %v127
  %177 = vmatprep.subr.mxu0 0.0
  %178 = vmatpush2.msra.mxu0 0.0
  %179 = vmatprep.subr.mxu0 0.0
  %180 = vmatpush2.msra.mxu0 0.0
  %181 = vmatprep.subr.mxu0 0.0
  %182 = vmatpush2.msra.mxu0 0.0
  %183 = vmatprep.subr.mxu0 0.0
  %184 = vmatpush2.msra.mxu0 0.0
  %185 = vmatprep.subr.mxu0 0.0
  %186 = vmatpush2.msra.mxu0 0.0
  %187 = vmatprep.subr.mxu0 0.0
  %188 = vmatpush2.msra.mxu0 0.0
  %189 = vmatprep.subr.mxu0 0.0
  %190 = vmatpush2.msra.mxu0 0.0
  %191 = vmatprep.subr.mxu0 0.0
  %192 = vmatpush2.msra.mxu0 0.0
  %193 = vmatprep.subr.mxu0 0.0
  %194 = vmatpush2.msra.mxu0 0.0
  %195 = vmatprep.subr.mxu0 0.0
  %196 = vmatpush2.msra.mxu0 0.0
  %197 = vmatprep.subr.mxu0 0.0
  %198 = vmatpush2.msra.mxu0 0.0
  %199 = vmatprep.subr.mxu0 0.0
  %200 = vmatpush2.msra.mxu0 0.0
  %201 = vmatprep.subr.mxu0 0.0
  %202 = vmatpush2.msra.mxu0 0.0
  %203 = vmatprep.subr.mxu0 0.0
  %204 = vmatpush2.msra.mxu0 0.0
  %205 = vmatprep.subr.mxu0 0.0
  %206 = vmatpush2.msra.mxu0 0.0
  %207 = vmatprep.subr.mxu0 0.0
  %208 = vmatpush2.msra.mxu0 0.0
  %209 = vmatprep.mubr.f32.mxu0 0.0
  %210 = vmatmul.mubr.f32.gmra.mxu0 %v140
  %v211 = vpop.f32.mrf.mxu0
  %v212 = vadd.f32 %v136, %v211
  %v213 = vpop.f32.mrf.mxu0
  %214 = vmatprep.mubr.f32.mxu0 0.0
  %215 = vmatmul.mubr.f32.gmra.mxu0 %v143
  %v216 = vpop.f32.mrf.mxu0
  %v217 = vadd.f32 %v136, %v216
  %v218 = vpop.f32.mrf.mxu0
  %219 = vdwg.mxu0
  %v220 = vmax.f32 %v212, 0.0
  %v221 = vmax.f32 %v217, 0.0
  %v222 = vld [vmem:[%s5] sm:$0xff]
  %v223 = vld [vmem:[%s5 + $0x8] sm:$0xff]
  %v224 = vld [vmem:[%s5 + $0x10] sm:$0xff]
  %v225 = vld [vmem:[%s5 + $0x18] sm:$0xff]
  %v226 = vld [vmem:[%s6] sm:$0x1]
  %v228 = vlaneseq
  %v229 = vshrl.u32 %v228, 7
  %v230 = vsub.s32 0, %v229
  %v231 = vrot.slane %v226, %v230
  %v234 = vsel %vm138, %v220, 0
  %v237 = vsel %vm138, %v221, 0
  %239 = vmatprep.subr.mxu0 0.0
  %240 = vmatpush1.msra.mxu0 0.0
  %241 = vmatprep.subr.mxu0 0.0
  %242 = vmatpush1.msra.mxu0 0.0
  %243 = vmatprep.subr.mxu0 0.0
  %244 = vmatpush1.msra.mxu0 0.0
  %245 = vmatprep.subr.mxu0 0.0
  %246 = vmatpush1.msra.mxu0 0.0
  %247 = vmatprep.subr.mxu0 0.0
  %248 = vmatpush1.msra.mxu0 0.0
  %249 = vmatprep.subr.mxu0 0.0
  %250 = vmatpush1.msra.mxu0 0.0
  %251 = vmatprep.subr.mxu0 0.0
  %252 = vmatpush1.msra.mxu0 0.0
  %253 = vmatprep.subr.mxu0 0.0
  %254 = vmatpush1.msra.mxu0 0.0
  %255 = vmatprep.subr.mxu0 0.0
  %256 = vmatpush1.msra.mxu0 0.0
  %257 = vmatprep.subr.mxu0 0.0
  %258 = vmatpush1.msra.mxu0 0.0
  %259 = vmatprep.subr.mxu0 0.0
  %260 = vmatpush1.msra.mxu0 0.0
  %261 = vmatprep.subr.mxu0 0.0
  %262 = vmatpush1.msra.mxu0 0.0
  %263 = vmatprep.subr.mxu0 0.0
  %264 = vmatpush1.msra.mxu0 %v225
  %265 = vmatprep.subr.mxu0 0.0
  %266 = vmatpush1.msra.mxu0 %v224
  %267 = vmatprep.subr.mxu0 0.0
  %268 = vmatpush1.msra.mxu0 %v223
  %269 = vmatprep.subr.mxu0 0.0
  %270 = vmatpush1.msra.mxu0 %v222
  %271 = vmatprep.subr.mxu0 0.0
  %272 = vmatpush2.msra.mxu0 0.0
  %273 = vmatprep.subr.mxu0 0.0
  %274 = vmatpush2.msra.mxu0 0.0
  %275 = vmatprep.subr.mxu0 0.0
  %276 = vmatpush2.msra.mxu0 0.0
  %277 = vmatprep.subr.mxu0 0.0
  %278 = vmatpush2.msra.mxu0 0.0
  %279 = vmatprep.subr.mxu0 0.0
  %280 = vmatpush2.msra.mxu0 0.0
  %281 = vmatprep.subr.mxu0 0.0
  %282 = vmatpush2.msra.mxu0 0.0
  %283 = vmatprep.subr.mxu0 0.0
  %284 = vmatpush2.msra.mxu0 0.0
  %285 = vmatprep.subr.mxu0 0.0
  %286 = vmatpush2.msra.mxu0 0.0
  %287 = vmatprep.subr.mxu0 0.0
  %288 = vmatpush2.msra.mxu0 0.0
  %289 = vmatprep.subr.mxu0 0.0
  %290 = vmatpush2.msra.mxu0 0.0
  %291 = vmatprep.subr.mxu0 0.0
  %292 = vmatpush2.msra.mxu0 0.0
  %293 = vmatprep.subr.mxu0 0.0
  %294 = vmatpush2.msra.mxu0 0.0
  %295 = vmatprep.subr.mxu0 0.0
  %296 = vmatpush2.msra.mxu0 0.0
  %297 = vmatprep.subr.mxu0 0.0
  %298 = vmatpush2.msra.mxu0 0.0
  %299 = vmatprep.subr.mxu0 0.0
  %300 = vmatpush2.msra.mxu0 0.0
  %301 = vmatprep.subr.mxu0 0.0
  %302 = vmatpush2.msra.mxu0 0.0
  %303 = vmatprep.mubr.f32.mxu0 0.0
  %304 = vmatmul.mubr.f32.gmra.mxu0 %v234
  %v305 = vpop.f32.mrf.mxu0
  %v306 = vadd.f32 %v231, %v305
  %v307 = vpop.f32.mrf.mxu0
  %308 = vmatprep.mubr.f32.mxu0 0.0
  %309 = vmatmul.mubr.f32.gmra.mxu0 %v237
  %v310 = vpop.f32.mrf.mxu0
  %v311 = vadd.f32 %v231, %v310
  %v312 = vpop.f32.mrf.mxu0
  %313 = vdwg.mxu0
  %v314 = vtanh.pop %v306
  %v315 = vtanh.pop %v311
  %v316 = vld [vmem:[%s7] sm:$0x1]
  %v318 = vlaneseq
  %v319 = vshrl.u32 %v318, 7
  %v320 = vsub.s32 0, %v319
  %v321 = vrot.slane %v316, %v320
  %v323 = vmul.f32 %v314, %v321
  %v324 = vmul.f32 %v315, %v321
  %v325 = vld [vmem:[%s8] sm:$0x1]
  %v327 = vlaneseq
  %v328 = vshrl.u32 %v327, 7
  %v329 = vsub.s32 0, %v328
  %v330 = vrot.slane %v325, %v329
  %v332 = vadd.f32 %v323, %v330
  %v333 = vadd.f32 %v324, %v330
  %vm334 = vcmask 31744
  %335 = vst.msk [vmem:[%s9] sm:$0xff] %vm334, %v332
  %336 = vst.msk [vmem:[%s9 + $0x8] sm:$0xff] %vm334, %v333
  // Predicated region
  $region38: #{actor_forward.1} parent=0 // pred_check
    _
  $region39: #{actor_forward.1} parent=0 // pred_check_branch
    %338 = sbr.rel (0) target = $region41
  $region40: #{actor_forward.1} parent=0 // pred_region
    _
  $region41: #{actor_forward.1} parent=0 // pred_fallthru
    _
  // Predicated region
  $region42: #{actor_forward.1} parent=0 // pred_check
    _
  $region43: #{actor_forward.1} parent=0 // pred_check_branch
    %340 = sbr.rel (0) target = $region45
  $region44: #{actor_forward.1} parent=0 // pred_region
    _
  $region45: #{actor_forward.1} parent=0 // pred_fallthru
    _

</llo_original>
